<compile_context>
chip_gen: v5e
topology: v5e:2x2
jax: 0.10.0
libtpu: 0.0.40
codegen_flags: <defaults>
</compile_context>

<pallas_src>
import jax
import jax.numpy as jnp
from jax.experimental import pallas as pl
from jax.experimental.pallas import tpu as pltpu

_EPS = 1e-6       # torch.nn.functional.pairwise_distance default eps
_NUM_ROWS = 15    # the torch loop: `for i in range(15)`


def _make_inner_cluster_loss_kernel(num_rows: int, num_mask: int):
    """Builds a fully fused kernel specialised on (static) row / mask counts."""

    def kernel(clu_ref, mask_ref, mw_ref, node_ref, cent_ref, out_ref):
        # clu_ref:  (N,)  int32  SMEM  — cluster id per node
        # mask_ref: (M,)  int32  SMEM  — masked node indices (-1 sentinel = none)
        # mw_ref:   (1,)  f32    SMEM  — mask_weight
        # node_ref: (N, dim)     VMEM  — node features (original dtype)
        # cent_ref: (K, dim)     VMEM  — cluster-center table (fully resident)
        # out_ref:  (1, 1) f32   VMEM  — accumulated loss
        mw = mw_ref[0]
        acc = jnp.zeros((1, 1), jnp.float32)
        for i in range(num_rows):                                   # static unroll (15 rows)
            lbl = clu_ref[i]                                        # scalar int32 from SMEM
            node_row = node_ref[pl.ds(i, 1), :].astype(jnp.float32)       # (1, dim)
            cent_row = cent_ref[pl.ds(lbl, 1), :].astype(jnp.float32)     # (1, dim) gathered in-kernel
            diff = node_row - cent_row + _EPS
            dist = jnp.sqrt(jnp.sum(diff * diff, axis=-1, keepdims=True))  # (1, 1)
            # weight: 1 for every row, plus (1 + mask_weight) if this row is masked
            hit = mask_ref[0] == i
            for m in range(1, num_mask):
                hit = jnp.logical_or(hit, mask_ref[m] == i)
            w = 1.0 + (1.0 + mw) * hit.astype(jnp.float32)
            acc = acc + w * dist
        out_ref[...] = acc

    return kernel


def myloss_forward(node_fea, clu_label, center_fea, mask_nodes, mask_weight,
                   sort_idx_rst=None):
    """JAX/Pallas equivalent of myloss.forward (which only calls inner_cluster_loss).

    node_fea:    (N, dim) float (any float dtype; widened to f32 in-kernel)
    clu_label:   (N,) int   — cluster id per node
    center_fea:  (K, dim) float — cluster centers (torch list-of-tensor -> stacked)
    mask_nodes:  (M,) int   — indices of masked nodes (may be empty)
    mask_weight: scalar
    sort_idx_rst: unused by forward (inter_cluster_loss is never called).
    """
    node_fea = jnp.asarray(node_fea)
    center_fea = jnp.asarray(center_fea)                      # stacks a list of centers
    clu_label = jnp.asarray(clu_label, dtype=jnp.int32)
    mask_nodes = jnp.asarray(mask_nodes, dtype=jnp.int32)
    if mask_nodes.size == 0:
        mask_nodes = jnp.array([-1], dtype=jnp.int32)         # sentinel: matches no row
    mw = jnp.asarray(mask_weight, dtype=jnp.float32).reshape(1)

    num_rows = min(_NUM_ROWS, node_fea.shape[0])              # torch asserts N >= 15 implicitly
    kernel = _make_inner_cluster_loss_kernel(num_rows, int(mask_nodes.shape[0]))

    out = pl.pallas_call(
        kernel,
        out_shape=jax.ShapeDtypeStruct((1, 1), jnp.float32),
        in_specs=[
            pl.BlockSpec(memory_space=pltpu.MemorySpace.SMEM),   # clu_label
            pl.BlockSpec(memory_space=pltpu.MemorySpace.SMEM),   # mask_nodes
            pl.BlockSpec(memory_space=pltpu.MemorySpace.SMEM),   # mask_weight
            pl.BlockSpec(memory_space=pltpu.MemorySpace.VMEM),   # node_fea
            pl.BlockSpec(memory_space=pltpu.MemorySpace.VMEM),   # center_fea
        ],
        out_specs=pl.BlockSpec(memory_space=pltpu.MemorySpace.VMEM),
    )(clu_label, mask_nodes, mw, node_fea, center_fea)

    # torch returns the accumulated pairwise_distance tensor of shape (1,)
    return out.reshape(1)


def _reference(node_fea, clu_label, center_fea, mask_nodes, mask_weight):
    # Pure-JAX reference mirroring the torch loop, for a sanity check.
    total = 0.0
    mask_set = set(int(m) for m in mask_nodes)
    for i in range(min(_NUM_ROWS, node_fea.shape[0])):
        diff = node_fea[i].astype(jnp.float32) - center_fea[int(clu_label[i])].astype(jnp.float32) + _EPS
        d = jnp.sqrt(jnp.sum(diff * diff))
        total = total + d
        if i in mask_set:
            total = total + (1.0 + mask_weight) * d
    return jnp.reshape(total, (1,))


if __name__ == "__main__":
    key = jax.random.PRNGKey(0)
    k1, k2, k3 = jax.random.split(key, 3)

    N, dim, K = 16, 32, 4            # small shapes; the loss loop only touches the first 15 nodes
    node_fea = jax.random.normal(k1, (N, dim), dtype=jnp.float32)
    center_fea = jax.random.normal(k2, (K, dim), dtype=jnp.float32)
    clu_label = jax.random.randint(k3, (N,), 0, K, dtype=jnp.int32)
    mask_nodes = jnp.array([1, 3, 7, 12], dtype=jnp.int32)
    mask_weight = 0.5

    out = myloss_forward(node_fea, clu_label, center_fea, mask_nodes, mask_weight)
    out = jax.block_until_ready(out)

    ref = _reference(node_fea, clu_label, center_fea, mask_nodes, mask_weight)
    assert out.shape == (1,)
    assert jnp.allclose(out, ref, rtol=1e-5, atol=1e-5), (out, ref)

    # Also exercise the empty-mask path once.
    out_nomask = jax.block_until_ready(
        myloss_forward(node_fea, clu_label, center_fea, jnp.zeros((0,), jnp.int32), mask_weight))
    ref_nomask = _reference(node_fea, clu_label, center_fea, [], mask_weight)
    assert jnp.allclose(out_nomask, ref_nomask, rtol=1e-5, atol=1e-5), (out_nomask, ref_nomask)

    # TODO(synk): inter_cluster_loss is dead code in forward (and relies on invalid
    # float slicing in the original torch source), so it is intentionally not ported.
    print("KERNEL_OK")
</pallas_src>

<mosaic_0001>
module attributes {stable_mosaic.version = 11 : i64} {
  func.func @kernel(%arg0: memref<16xi32, #tpu.memory_space<smem>>, %arg1: memref<4xi32, #tpu.memory_space<smem>>, %arg2: memref<1xf32, #tpu.memory_space<smem>>, %arg3: memref<16x32xf32, #tpu.memory_space<vmem>>, %arg4: memref<4x32xf32, #tpu.memory_space<vmem>>, %arg5: memref<1x1xf32, #tpu.memory_space<vmem>>) attributes {dimension_semantics = [], scalar_prefetch = 0 : i64, scratch_operands = 0 : i64, tpu.core_type = #tpu.core_type<tc>} {
    %c0 = arith.constant 0 : index
    %0 = memref.load %arg2[%c0] : memref<1xf32, #tpu.memory_space<smem>>
    %cst = arith.constant 0.000000e+00 : f32
    %1 = vector.broadcast %cst : f32 to vector<1x1xf32>
    %c0_0 = arith.constant 0 : index
    %2 = memref.load %arg0[%c0_0] : memref<16xi32, #tpu.memory_space<smem>>
    %c0_1 = arith.constant 0 : index
    %c0_2 = arith.constant 0 : index
    %3 = vector.load %arg3[%c0_1, %c0_2] : memref<16x32xf32, #tpu.memory_space<vmem>>, vector<1x32xf32>
    %4 = arith.index_cast %2 : i32 to index
    %c0_3 = arith.constant 0 : index
    %5 = vector.load %arg4[%4, %c0_3] : memref<4x32xf32, #tpu.memory_space<vmem>>, vector<1x32xf32>
    %6 = arith.subf %3, %5 : vector<1x32xf32>
    %cst_4 = arith.constant 9.99999997E-7 : f32
    %7 = vector.broadcast %cst_4 : f32 to vector<1x32xf32>
    %8 = arith.addf %6, %7 : vector<1x32xf32>
    %9 = arith.mulf %8, %8 : vector<1x32xf32>
    %cst_5 = arith.constant dense<0.000000e+00> : vector<1xf32>
    %10 = vector.multi_reduction <add>, %9, %cst_5 [1] : vector<1x32xf32> to vector<1xf32>
    %11 = vector.shape_cast %10 : vector<1xf32> to vector<1x1xf32>
    %12 = math.sqrt %11 : vector<1x1xf32>
    %c0_6 = arith.constant 0 : index
    %13 = memref.load %arg1[%c0_6] : memref<4xi32, #tpu.memory_space<smem>>
    %c0_i32 = arith.constant 0 : i32
    %14 = arith.cmpi eq, %13, %c0_i32 : i32
    %c1 = arith.constant 1 : index
    %15 = memref.load %arg1[%c1] : memref<4xi32, #tpu.memory_space<smem>>
    %c0_i32_7 = arith.constant 0 : i32
    %16 = arith.cmpi eq, %15, %c0_i32_7 : i32
    %17 = arith.ori %14, %16 : i1
    %c2 = arith.constant 2 : index
    %18 = memref.load %arg1[%c2] : memref<4xi32, #tpu.memory_space<smem>>
    %c0_i32_8 = arith.constant 0 : i32
    %19 = arith.cmpi eq, %18, %c0_i32_8 : i32
    %20 = arith.ori %17, %19 : i1
    %c3 = arith.constant 3 : index
    %21 = memref.load %arg1[%c3] : memref<4xi32, #tpu.memory_space<smem>>
    %c0_i32_9 = arith.constant 0 : i32
    %22 = arith.cmpi eq, %21, %c0_i32_9 : i32
    %23 = arith.ori %20, %22 : i1
    %cst_10 = arith.constant 1.000000e+00 : f32
    %24 = arith.addf %cst_10, %0 : f32
    %25 = arith.extui %23 : i1 to i32
    %26 = arith.sitofp %25 : i32 to f32
    %27 = arith.mulf %24, %26 : f32
    %cst_11 = arith.constant 1.000000e+00 : f32
    %28 = arith.addf %cst_11, %27 : f32
    %29 = vector.broadcast %28 : f32 to vector<1x1xf32>
    %30 = arith.mulf %29, %12 : vector<1x1xf32>
    %31 = arith.addf %1, %30 : vector<1x1xf32>
    %c1_12 = arith.constant 1 : index
    %32 = memref.load %arg0[%c1_12] : memref<16xi32, #tpu.memory_space<smem>>
    %c1_13 = arith.constant 1 : index
    %c0_14 = arith.constant 0 : index
    %33 = vector.load %arg3[%c1_13, %c0_14] : memref<16x32xf32, #tpu.memory_space<vmem>>, vector<1x32xf32>
    %34 = arith.index_cast %32 : i32 to index
    %c0_15 = arith.constant 0 : index
    %35 = vector.load %arg4[%34, %c0_15] : memref<4x32xf32, #tpu.memory_space<vmem>>, vector<1x32xf32>
    %36 = arith.subf %33, %35 : vector<1x32xf32>
    %cst_16 = arith.constant 9.99999997E-7 : f32
    %37 = vector.broadcast %cst_16 : f32 to vector<1x32xf32>
    %38 = arith.addf %36, %37 : vector<1x32xf32>
    %39 = arith.mulf %38, %38 : vector<1x32xf32>
    %cst_17 = arith.constant dense<0.000000e+00> : vector<1xf32>
    %40 = vector.multi_reduction <add>, %39, %cst_17 [1] : vector<1x32xf32> to vector<1xf32>
    %41 = vector.shape_cast %40 : vector<1xf32> to vector<1x1xf32>
    %42 = math.sqrt %41 : vector<1x1xf32>
    %c0_18 = arith.constant 0 : index
    %43 = memref.load %arg1[%c0_18] : memref<4xi32, #tpu.memory_space<smem>>
    %c1_i32 = arith.constant 1 : i32
    %44 = arith.cmpi eq, %43, %c1_i32 : i32
    %c1_19 = arith.constant 1 : index
    %45 = memref.load %arg1[%c1_19] : memref<4xi32, #tpu.memory_space<smem>>
    %c1_i32_20 = arith.constant 1 : i32
    %46 = arith.cmpi eq, %45, %c1_i32_20 : i32
    %47 = arith.ori %44, %46 : i1
    %c2_21 = arith.constant 2 : index
    %48 = memref.load %arg1[%c2_21] : memref<4xi32, #tpu.memory_space<smem>>
    %c1_i32_22 = arith.constant 1 : i32
    %49 = arith.cmpi eq, %48, %c1_i32_22 : i32
    %50 = arith.ori %47, %49 : i1
    %c3_23 = arith.constant 3 : index
    %51 = memref.load %arg1[%c3_23] : memref<4xi32, #tpu.memory_space<smem>>
    %c1_i32_24 = arith.constant 1 : i32
    %52 = arith.cmpi eq, %51, %c1_i32_24 : i32
    %53 = arith.ori %50, %52 : i1
    %cst_25 = arith.constant 1.000000e+00 : f32
    %54 = arith.addf %cst_25, %0 : f32
    %55 = arith.extui %53 : i1 to i32
    %56 = arith.sitofp %55 : i32 to f32
    %57 = arith.mulf %54, %56 : f32
    %cst_26 = arith.constant 1.000000e+00 : f32
    %58 = arith.addf %cst_26, %57 : f32
    %59 = vector.broadcast %58 : f32 to vector<1x1xf32>
    %60 = arith.mulf %59, %42 : vector<1x1xf32>
    %61 = arith.addf %31, %60 : vector<1x1xf32>
    %c2_27 = arith.constant 2 : index
    %62 = memref.load %arg0[%c2_27] : memref<16xi32, #tpu.memory_space<smem>>
    %c2_28 = arith.constant 2 : index
    %c0_29 = arith.constant 0 : index
    %63 = vector.load %arg3[%c2_28, %c0_29] : memref<16x32xf32, #tpu.memory_space<vmem>>, vector<1x32xf32>
    %64 = arith.index_cast %62 : i32 to index
    %c0_30 = arith.constant 0 : index
    %65 = vector.load %arg4[%64, %c0_30] : memref<4x32xf32, #tpu.memory_space<vmem>>, vector<1x32xf32>
    %66 = arith.subf %63, %65 : vector<1x32xf32>
    %cst_31 = arith.constant 9.99999997E-7 : f32
    %67 = vector.broadcast %cst_31 : f32 to vector<1x32xf32>
    %68 = arith.addf %66, %67 : vector<1x32xf32>
    %69 = arith.mulf %68, %68 : vector<1x32xf32>
    %cst_32 = arith.constant dense<0.000000e+00> : vector<1xf32>
    %70 = vector.multi_reduction <add>, %69, %cst_32 [1] : vector<1x32xf32> to vector<1xf32>
    %71 = vector.shape_cast %70 : vector<1xf32> to vector<1x1xf32>
    %72 = math.sqrt %71 : vector<1x1xf32>
    %c0_33 = arith.constant 0 : index
    %73 = memref.load %arg1[%c0_33] : memref<4xi32, #tpu.memory_space<smem>>
    %c2_i32 = arith.constant 2 : i32
    %74 = arith.cmpi eq, %73, %c2_i32 : i32
    %c1_34 = arith.constant 1 : index
    %75 = memref.load %arg1[%c1_34] : memref<4xi32, #tpu.memory_space<smem>>
    %c2_i32_35 = arith.constant 2 : i32
    %76 = arith.cmpi eq, %75, %c2_i32_35 : i32
    %77 = arith.ori %74, %76 : i1
    %c2_36 = arith.constant 2 : index
    %78 = memref.load %arg1[%c2_36] : memref<4xi32, #tpu.memory_space<smem>>
    %c2_i32_37 = arith.constant 2 : i32
    %79 = arith.cmpi eq, %78, %c2_i32_37 : i32
    %80 = arith.ori %77, %79 : i1
    %c3_38 = arith.constant 3 : index
    %81 = memref.load %arg1[%c3_38] : memref<4xi32, #tpu.memory_space<smem>>
    %c2_i32_39 = arith.constant 2 : i32
    %82 = arith.cmpi eq, %81, %c2_i32_39 : i32
    %83 = arith.ori %80, %82 : i1
    %cst_40 = arith.constant 1.000000e+00 : f32
    %84 = arith.addf %cst_40, %0 : f32
    %85 = arith.extui %83 : i1 to i32
    %86 = arith.sitofp %85 : i32 to f32
    %87 = arith.mulf %84, %86 : f32
    %cst_41 = arith.constant 1.000000e+00 : f32
    %88 = arith.addf %cst_41, %87 : f32
    %89 = vector.broadcast %88 : f32 to vector<1x1xf32>
    %90 = arith.mulf %89, %72 : vector<1x1xf32>
    %91 = arith.addf %61, %90 : vector<1x1xf32>
    %c3_42 = arith.constant 3 : index
    %92 = memref.load %arg0[%c3_42] : memref<16xi32, #tpu.memory_space<smem>>
    %c3_43 = arith.constant 3 : index
    %c0_44 = arith.constant 0 : index
    %93 = vector.load %arg3[%c3_43, %c0_44] : memref<16x32xf32, #tpu.memory_space<vmem>>, vector<1x32xf32>
    %94 = arith.index_cast %92 : i32 to index
    %c0_45 = arith.constant 0 : index
    %95 = vector.load %arg4[%94, %c0_45] : memref<4x32xf32, #tpu.memory_space<vmem>>, vector<1x32xf32>
    %96 = arith.subf %93, %95 : vector<1x32xf32>
    %cst_46 = arith.constant 9.99999997E-7 : f32
    %97 = vector.broadcast %cst_46 : f32 to vector<1x32xf32>
    %98 = arith.addf %96, %97 : vector<1x32xf32>
    %99 = arith.mulf %98, %98 : vector<1x32xf32>
    %cst_47 = arith.constant dense<0.000000e+00> : vector<1xf32>
    %100 = vector.multi_reduction <add>, %99, %cst_47 [1] : vector<1x32xf32> to vector<1xf32>
    %101 = vector.shape_cast %100 : vector<1xf32> to vector<1x1xf32>
    %102 = math.sqrt %101 : vector<1x1xf32>
    %c0_48 = arith.constant 0 : index
    %103 = memref.load %arg1[%c0_48] : memref<4xi32, #tpu.memory_space<smem>>
    %c3_i32 = arith.constant 3 : i32
    %104 = arith.cmpi eq, %103, %c3_i32 : i32
    %c1_49 = arith.constant 1 : index
    %105 = memref.load %arg1[%c1_49] : memref<4xi32, #tpu.memory_space<smem>>
    %c3_i32_50 = arith.constant 3 : i32
    %106 = arith.cmpi eq, %105, %c3_i32_50 : i32
    %107 = arith.ori %104, %106 : i1
    %c2_51 = arith.constant 2 : index
    %108 = memref.load %arg1[%c2_51] : memref<4xi32, #tpu.memory_space<smem>>
    %c3_i32_52 = arith.constant 3 : i32
    %109 = arith.cmpi eq, %108, %c3_i32_52 : i32
    %110 = arith.ori %107, %109 : i1
    %c3_53 = arith.constant 3 : index
    %111 = memref.load %arg1[%c3_53] : memref<4xi32, #tpu.memory_space<smem>>
    %c3_i32_54 = arith.constant 3 : i32
    %112 = arith.cmpi eq, %111, %c3_i32_54 : i32
    %113 = arith.ori %110, %112 : i1
    %cst_55 = arith.constant 1.000000e+00 : f32
    %114 = arith.addf %cst_55, %0 : f32
    %115 = arith.extui %113 : i1 to i32
    %116 = arith.sitofp %115 : i32 to f32
    %117 = arith.mulf %114, %116 : f32
    %cst_56 = arith.constant 1.000000e+00 : f32
    %118 = arith.addf %cst_56, %117 : f32
    %119 = vector.broadcast %118 : f32 to vector<1x1xf32>
    %120 = arith.mulf %119, %102 : vector<1x1xf32>
    %121 = arith.addf %91, %120 : vector<1x1xf32>
    %c4 = arith.constant 4 : index
    %122 = memref.load %arg0[%c4] : memref<16xi32, #tpu.memory_space<smem>>
    %c4_57 = arith.constant 4 : index
    %c0_58 = arith.constant 0 : index
    %123 = vector.load %arg3[%c4_57, %c0_58] : memref<16x32xf32, #tpu.memory_space<vmem>>, vector<1x32xf32>
    %124 = arith.index_cast %122 : i32 to index
    %c0_59 = arith.constant 0 : index
    %125 = vector.load %arg4[%124, %c0_59] : memref<4x32xf32, #tpu.memory_space<vmem>>, vector<1x32xf32>
    %126 = arith.subf %123, %125 : vector<1x32xf32>
    %cst_60 = arith.constant 9.99999997E-7 : f32
    %127 = vector.broadcast %cst_60 : f32 to vector<1x32xf32>
    %128 = arith.addf %126, %127 : vector<1x32xf32>
    %129 = arith.mulf %128, %128 : vector<1x32xf32>
    %cst_61 = arith.constant dense<0.000000e+00> : vector<1xf32>
    %130 = vector.multi_reduction <add>, %129, %cst_61 [1] : vector<1x32xf32> to vector<1xf32>
    %131 = vector.shape_cast %130 : vector<1xf32> to vector<1x1xf32>
    %132 = math.sqrt %131 : vector<1x1xf32>
    %c0_62 = arith.constant 0 : index
    %133 = memref.load %arg1[%c0_62] : memref<4xi32, #tpu.memory_space<smem>>
    %c4_i32 = arith.constant 4 : i32
    %134 = arith.cmpi eq, %133, %c4_i32 : i32
    %c1_63 = arith.constant 1 : index
    %135 = memref.load %arg1[%c1_63] : memref<4xi32, #tpu.memory_space<smem>>
    %c4_i32_64 = arith.constant 4 : i32
    %136 = arith.cmpi eq, %135, %c4_i32_64 : i32
    %137 = arith.ori %134, %136 : i1
    %c2_65 = arith.constant 2 : index
    %138 = memref.load %arg1[%c2_65] : memref<4xi32, #tpu.memory_space<smem>>
    %c4_i32_66 = arith.constant 4 : i32
    %139 = arith.cmpi eq, %138, %c4_i32_66 : i32
    %140 = arith.ori %137, %139 : i1
    %c3_67 = arith.constant 3 : index
    %141 = memref.load %arg1[%c3_67] : memref<4xi32, #tpu.memory_space<smem>>
    %c4_i32_68 = arith.constant 4 : i32
    %142 = arith.cmpi eq, %141, %c4_i32_68 : i32
    %143 = arith.ori %140, %142 : i1
    %cst_69 = arith.constant 1.000000e+00 : f32
    %144 = arith.addf %cst_69, %0 : f32
    %145 = arith.extui %143 : i1 to i32
    %146 = arith.sitofp %145 : i32 to f32
    %147 = arith.mulf %144, %146 : f32
    %cst_70 = arith.constant 1.000000e+00 : f32
    %148 = arith.addf %cst_70, %147 : f32
    %149 = vector.broadcast %148 : f32 to vector<1x1xf32>
    %150 = arith.mulf %149, %132 : vector<1x1xf32>
    %151 = arith.addf %121, %150 : vector<1x1xf32>
    %c5 = arith.constant 5 : index
    %152 = memref.load %arg0[%c5] : memref<16xi32, #tpu.memory_space<smem>>
    %c5_71 = arith.constant 5 : index
    %c0_72 = arith.constant 0 : index
    %153 = vector.load %arg3[%c5_71, %c0_72] : memref<16x32xf32, #tpu.memory_space<vmem>>, vector<1x32xf32>
    %154 = arith.index_cast %152 : i32 to index
    %c0_73 = arith.constant 0 : index
    %155 = vector.load %arg4[%154, %c0_73] : memref<4x32xf32, #tpu.memory_space<vmem>>, vector<1x32xf32>
    %156 = arith.subf %153, %155 : vector<1x32xf32>
    %cst_74 = arith.constant 9.99999997E-7 : f32
    %157 = vector.broadcast %cst_74 : f32 to vector<1x32xf32>
    %158 = arith.addf %156, %157 : vector<1x32xf32>
    %159 = arith.mulf %158, %158 : vector<1x32xf32>
    %cst_75 = arith.constant dense<0.000000e+00> : vector<1xf32>
    %160 = vector.multi_reduction <add>, %159, %cst_75 [1] : vector<1x32xf32> to vector<1xf32>
    %161 = vector.shape_cast %160 : vector<1xf32> to vector<1x1xf32>
    %162 = math.sqrt %161 : vector<1x1xf32>
    %c0_76 = arith.constant 0 : index
    %163 = memref.load %arg1[%c0_76] : memref<4xi32, #tpu.memory_space<smem>>
    %c5_i32 = arith.constant 5 : i32
    %164 = arith.cmpi eq, %163, %c5_i32 : i32
    %c1_77 = arith.constant 1 : index
    %165 = memref.load %arg1[%c1_77] : memref<4xi32, #tpu.memory_space<smem>>
    %c5_i32_78 = arith.constant 5 : i32
    %166 = arith.cmpi eq, %165, %c5_i32_78 : i32
    %167 = arith.ori %164, %166 : i1
    %c2_79 = arith.constant 2 : index
    %168 = memref.load %arg1[%c2_79] : memref<4xi32, #tpu.memory_space<smem>>
    %c5_i32_80 = arith.constant 5 : i32
    %169 = arith.cmpi eq, %168, %c5_i32_80 : i32
    %170 = arith.ori %167, %169 : i1
    %c3_81 = arith.constant 3 : index
    %171 = memref.load %arg1[%c3_81] : memref<4xi32, #tpu.memory_space<smem>>
    %c5_i32_82 = arith.constant 5 : i32
    %172 = arith.cmpi eq, %171, %c5_i32_82 : i32
    %173 = arith.ori %170, %172 : i1
    %cst_83 = arith.constant 1.000000e+00 : f32
    %174 = arith.addf %cst_83, %0 : f32
    %175 = arith.extui %173 : i1 to i32
    %176 = arith.sitofp %175 : i32 to f32
    %177 = arith.mulf %174, %176 : f32
    %cst_84 = arith.constant 1.000000e+00 : f32
    %178 = arith.addf %cst_84, %177 : f32
    %179 = vector.broadcast %178 : f32 to vector<1x1xf32>
    %180 = arith.mulf %179, %162 : vector<1x1xf32>
    %181 = arith.addf %151, %180 : vector<1x1xf32>
    %c6 = arith.constant 6 : index
    %182 = memref.load %arg0[%c6] : memref<16xi32, #tpu.memory_space<smem>>
    %c6_85 = arith.constant 6 : index
    %c0_86 = arith.constant 0 : index
    %183 = vector.load %arg3[%c6_85, %c0_86] : memref<16x32xf32, #tpu.memory_space<vmem>>, vector<1x32xf32>
    %184 = arith.index_cast %182 : i32 to index
    %c0_87 = arith.constant 0 : index
    %185 = vector.load %arg4[%184, %c0_87] : memref<4x32xf32, #tpu.memory_space<vmem>>, vector<1x32xf32>
    %186 = arith.subf %183, %185 : vector<1x32xf32>
    %cst_88 = arith.constant 9.99999997E-7 : f32
    %187 = vector.broadcast %cst_88 : f32 to vector<1x32xf32>
    %188 = arith.addf %186, %187 : vector<1x32xf32>
    %189 = arith.mulf %188, %188 : vector<1x32xf32>
    %cst_89 = arith.constant dense<0.000000e+00> : vector<1xf32>
    %190 = vector.multi_reduction <add>, %189, %cst_89 [1] : vector<1x32xf32> to vector<1xf32>
    %191 = vector.shape_cast %190 : vector<1xf32> to vector<1x1xf32>
    %192 = math.sqrt %191 : vector<1x1xf32>
    %c0_90 = arith.constant 0 : index
    %193 = memref.load %arg1[%c0_90] : memref<4xi32, #tpu.memory_space<smem>>
    %c6_i32 = arith.constant 6 : i32
    %194 = arith.cmpi eq, %193, %c6_i32 : i32
    %c1_91 = arith.constant 1 : index
    %195 = memref.load %arg1[%c1_91] : memref<4xi32, #tpu.memory_space<smem>>
    %c6_i32_92 = arith.constant 6 : i32
    %196 = arith.cmpi eq, %195, %c6_i32_92 : i32
    %197 = arith.ori %194, %196 : i1
    %c2_93 = arith.constant 2 : index
    %198 = memref.load %arg1[%c2_93] : memref<4xi32, #tpu.memory_space<smem>>
    %c6_i32_94 = arith.constant 6 : i32
    %199 = arith.cmpi eq, %198, %c6_i32_94 : i32
    %200 = arith.ori %197, %199 : i1
    %c3_95 = arith.constant 3 : index
    %201 = memref.load %arg1[%c3_95] : memref<4xi32, #tpu.memory_space<smem>>
    %c6_i32_96 = arith.constant 6 : i32
    %202 = arith.cmpi eq, %201, %c6_i32_96 : i32
    %203 = arith.ori %200, %202 : i1
    %cst_97 = arith.constant 1.000000e+00 : f32
    %204 = arith.addf %cst_97, %0 : f32
    %205 = arith.extui %203 : i1 to i32
    %206 = arith.sitofp %205 : i32 to f32
    %207 = arith.mulf %204, %206 : f32
    %cst_98 = arith.constant 1.000000e+00 : f32
    %208 = arith.addf %cst_98, %207 : f32
    %209 = vector.broadcast %208 : f32 to vector<1x1xf32>
    %210 = arith.mulf %209, %192 : vector<1x1xf32>
    %211 = arith.addf %181, %210 : vector<1x1xf32>
    %c7 = arith.constant 7 : index
    %212 = memref.load %arg0[%c7] : memref<16xi32, #tpu.memory_space<smem>>
    %c7_99 = arith.constant 7 : index
    %c0_100 = arith.constant 0 : index
    %213 = vector.load %arg3[%c7_99, %c0_100] : memref<16x32xf32, #tpu.memory_space<vmem>>, vector<1x32xf32>
    %214 = arith.index_cast %212 : i32 to index
    %c0_101 = arith.constant 0 : index
    %215 = vector.load %arg4[%214, %c0_101] : memref<4x32xf32, #tpu.memory_space<vmem>>, vector<1x32xf32>
    %216 = arith.subf %213, %215 : vector<1x32xf32>
    %cst_102 = arith.constant 9.99999997E-7 : f32
    %217 = vector.broadcast %cst_102 : f32 to vector<1x32xf32>
    %218 = arith.addf %216, %217 : vector<1x32xf32>
    %219 = arith.mulf %218, %218 : vector<1x32xf32>
    %cst_103 = arith.constant dense<0.000000e+00> : vector<1xf32>
    %220 = vector.multi_reduction <add>, %219, %cst_103 [1] : vector<1x32xf32> to vector<1xf32>
    %221 = vector.shape_cast %220 : vector<1xf32> to vector<1x1xf32>
    %222 = math.sqrt %221 : vector<1x1xf32>
    %c0_104 = arith.constant 0 : index
    %223 = memref.load %arg1[%c0_104] : memref<4xi32, #tpu.memory_space<smem>>
    %c7_i32 = arith.constant 7 : i32
    %224 = arith.cmpi eq, %223, %c7_i32 : i32
    %c1_105 = arith.constant 1 : index
    %225 = memref.load %arg1[%c1_105] : memref<4xi32, #tpu.memory_space<smem>>
    %c7_i32_106 = arith.constant 7 : i32
    %226 = arith.cmpi eq, %225, %c7_i32_106 : i32
    %227 = arith.ori %224, %226 : i1
    %c2_107 = arith.constant 2 : index
    %228 = memref.load %arg1[%c2_107] : memref<4xi32, #tpu.memory_space<smem>>
    %c7_i32_108 = arith.constant 7 : i32
    %229 = arith.cmpi eq, %228, %c7_i32_108 : i32
    %230 = arith.ori %227, %229 : i1
    %c3_109 = arith.constant 3 : index
    %231 = memref.load %arg1[%c3_109] : memref<4xi32, #tpu.memory_space<smem>>
    %c7_i32_110 = arith.constant 7 : i32
    %232 = arith.cmpi eq, %231, %c7_i32_110 : i32
    %233 = arith.ori %230, %232 : i1
    %cst_111 = arith.constant 1.000000e+00 : f32
    %234 = arith.addf %cst_111, %0 : f32
    %235 = arith.extui %233 : i1 to i32
    %236 = arith.sitofp %235 : i32 to f32
    %237 = arith.mulf %234, %236 : f32
    %cst_112 = arith.constant 1.000000e+00 : f32
    %238 = arith.addf %cst_112, %237 : f32
    %239 = vector.broadcast %238 : f32 to vector<1x1xf32>
    %240 = arith.mulf %239, %222 : vector<1x1xf32>
    %241 = arith.addf %211, %240 : vector<1x1xf32>
    %c8 = arith.constant 8 : index
    %242 = memref.load %arg0[%c8] : memref<16xi32, #tpu.memory_space<smem>>
    %c8_113 = arith.constant 8 : index
    %c0_114 = arith.constant 0 : index
    %243 = vector.load %arg3[%c8_113, %c0_114] : memref<16x32xf32, #tpu.memory_space<vmem>>, vector<1x32xf32>
    %244 = arith.index_cast %242 : i32 to index
    %c0_115 = arith.constant 0 : index
    %245 = vector.load %arg4[%244, %c0_115] : memref<4x32xf32, #tpu.memory_space<vmem>>, vector<1x32xf32>
    %246 = arith.subf %243, %245 : vector<1x32xf32>
    %cst_116 = arith.constant 9.99999997E-7 : f32
    %247 = vector.broadcast %cst_116 : f32 to vector<1x32xf32>
    %248 = arith.addf %246, %247 : vector<1x32xf32>
    %249 = arith.mulf %248, %248 : vector<1x32xf32>
    %cst_117 = arith.constant dense<0.000000e+00> : vector<1xf32>
    %250 = vector.multi_reduction <add>, %249, %cst_117 [1] : vector<1x32xf32> to vector<1xf32>
    %251 = vector.shape_cast %250 : vector<1xf32> to vector<1x1xf32>
    %252 = math.sqrt %251 : vector<1x1xf32>
    %c0_118 = arith.constant 0 : index
    %253 = memref.load %arg1[%c0_118] : memref<4xi32, #tpu.memory_space<smem>>
    %c8_i32 = arith.constant 8 : i32
    %254 = arith.cmpi eq, %253, %c8_i32 : i32
    %c1_119 = arith.constant 1 : index
    %255 = memref.load %arg1[%c1_119] : memref<4xi32, #tpu.memory_space<smem>>
    %c8_i32_120 = arith.constant 8 : i32
    %256 = arith.cmpi eq, %255, %c8_i32_120 : i32
    %257 = arith.ori %254, %256 : i1
    %c2_121 = arith.constant 2 : index
    %258 = memref.load %arg1[%c2_121] : memref<4xi32, #tpu.memory_space<smem>>
    %c8_i32_122 = arith.constant 8 : i32
    %259 = arith.cmpi eq, %258, %c8_i32_122 : i32
    %260 = arith.ori %257, %259 : i1
    %c3_123 = arith.constant 3 : index
    %261 = memref.load %arg1[%c3_123] : memref<4xi32, #tpu.memory_space<smem>>
    %c8_i32_124 = arith.constant 8 : i32
    %262 = arith.cmpi eq, %261, %c8_i32_124 : i32
    %263 = arith.ori %260, %262 : i1
    %cst_125 = arith.constant 1.000000e+00 : f32
    %264 = arith.addf %cst_125, %0 : f32
    %265 = arith.extui %263 : i1 to i32
    %266 = arith.sitofp %265 : i32 to f32
    %267 = arith.mulf %264, %266 : f32
    %cst_126 = arith.constant 1.000000e+00 : f32
    %268 = arith.addf %cst_126, %267 : f32
    %269 = vector.broadcast %268 : f32 to vector<1x1xf32>
    %270 = arith.mulf %269, %252 : vector<1x1xf32>
    %271 = arith.addf %241, %270 : vector<1x1xf32>
    %c9 = arith.constant 9 : index
    %272 = memref.load %arg0[%c9] : memref<16xi32, #tpu.memory_space<smem>>
    %c9_127 = arith.constant 9 : index
    %c0_128 = arith.constant 0 : index
    %273 = vector.load %arg3[%c9_127, %c0_128] : memref<16x32xf32, #tpu.memory_space<vmem>>, vector<1x32xf32>
    %274 = arith.index_cast %272 : i32 to index
    %c0_129 = arith.constant 0 : index
    %275 = vector.load %arg4[%274, %c0_129] : memref<4x32xf32, #tpu.memory_space<vmem>>, vector<1x32xf32>
    %276 = arith.subf %273, %275 : vector<1x32xf32>
    %cst_130 = arith.constant 9.99999997E-7 : f32
    %277 = vector.broadcast %cst_130 : f32 to vector<1x32xf32>
    %278 = arith.addf %276, %277 : vector<1x32xf32>
    %279 = arith.mulf %278, %278 : vector<1x32xf32>
    %cst_131 = arith.constant dense<0.000000e+00> : vector<1xf32>
    %280 = vector.multi_reduction <add>, %279, %cst_131 [1] : vector<1x32xf32> to vector<1xf32>
    %281 = vector.shape_cast %280 : vector<1xf32> to vector<1x1xf32>
    %282 = math.sqrt %281 : vector<1x1xf32>
    %c0_132 = arith.constant 0 : index
    %283 = memref.load %arg1[%c0_132] : memref<4xi32, #tpu.memory_space<smem>>
    %c9_i32 = arith.constant 9 : i32
    %284 = arith.cmpi eq, %283, %c9_i32 : i32
    %c1_133 = arith.constant 1 : index
    %285 = memref.load %arg1[%c1_133] : memref<4xi32, #tpu.memory_space<smem>>
    %c9_i32_134 = arith.constant 9 : i32
    %286 = arith.cmpi eq, %285, %c9_i32_134 : i32
    %287 = arith.ori %284, %286 : i1
    %c2_135 = arith.constant 2 : index
    %288 = memref.load %arg1[%c2_135] : memref<4xi32, #tpu.memory_space<smem>>
    %c9_i32_136 = arith.constant 9 : i32
    %289 = arith.cmpi eq, %288, %c9_i32_136 : i32
    %290 = arith.ori %287, %289 : i1
    %c3_137 = arith.constant 3 : index
    %291 = memref.load %arg1[%c3_137] : memref<4xi32, #tpu.memory_space<smem>>
    %c9_i32_138 = arith.constant 9 : i32
    %292 = arith.cmpi eq, %291, %c9_i32_138 : i32
    %293 = arith.ori %290, %292 : i1
    %cst_139 = arith.constant 1.000000e+00 : f32
    %294 = arith.addf %cst_139, %0 : f32
    %295 = arith.extui %293 : i1 to i32
    %296 = arith.sitofp %295 : i32 to f32
    %297 = arith.mulf %294, %296 : f32
    %cst_140 = arith.constant 1.000000e+00 : f32
    %298 = arith.addf %cst_140, %297 : f32
    %299 = vector.broadcast %298 : f32 to vector<1x1xf32>
    %300 = arith.mulf %299, %282 : vector<1x1xf32>
    %301 = arith.addf %271, %300 : vector<1x1xf32>
    %c10 = arith.constant 10 : index
    %302 = memref.load %arg0[%c10] : memref<16xi32, #tpu.memory_space<smem>>
    %c10_141 = arith.constant 10 : index
    %c0_142 = arith.constant 0 : index
    %303 = vector.load %arg3[%c10_141, %c0_142] : memref<16x32xf32, #tpu.memory_space<vmem>>, vector<1x32xf32>
    %304 = arith.index_cast %302 : i32 to index
    %c0_143 = arith.constant 0 : index
    %305 = vector.load %arg4[%304, %c0_143] : memref<4x32xf32, #tpu.memory_space<vmem>>, vector<1x32xf32>
    %306 = arith.subf %303, %305 : vector<1x32xf32>
    %cst_144 = arith.constant 9.99999997E-7 : f32
    %307 = vector.broadcast %cst_144 : f32 to vector<1x32xf32>
    %308 = arith.addf %306, %307 : vector<1x32xf32>
    %309 = arith.mulf %308, %308 : vector<1x32xf32>
    %cst_145 = arith.constant dense<0.000000e+00> : vector<1xf32>
    %310 = vector.multi_reduction <add>, %309, %cst_145 [1] : vector<1x32xf32> to vector<1xf32>
    %311 = vector.shape_cast %310 : vector<1xf32> to vector<1x1xf32>
    %312 = math.sqrt %311 : vector<1x1xf32>
    %c0_146 = arith.constant 0 : index
    %313 = memref.load %arg1[%c0_146] : memref<4xi32, #tpu.memory_space<smem>>
    %c10_i32 = arith.constant 10 : i32
    %314 = arith.cmpi eq, %313, %c10_i32 : i32
    %c1_147 = arith.constant 1 : index
    %315 = memref.load %arg1[%c1_147] : memref<4xi32, #tpu.memory_space<smem>>
    %c10_i32_148 = arith.constant 10 : i32
    %316 = arith.cmpi eq, %315, %c10_i32_148 : i32
    %317 = arith.ori %314, %316 : i1
    %c2_149 = arith.constant 2 : index
    %318 = memref.load %arg1[%c2_149] : memref<4xi32, #tpu.memory_space<smem>>
    %c10_i32_150 = arith.constant 10 : i32
    %319 = arith.cmpi eq, %318, %c10_i32_150 : i32
    %320 = arith.ori %317, %319 : i1
    %c3_151 = arith.constant 3 : index
    %321 = memref.load %arg1[%c3_151] : memref<4xi32, #tpu.memory_space<smem>>
    %c10_i32_152 = arith.constant 10 : i32
    %322 = arith.cmpi eq, %321, %c10_i32_152 : i32
    %323 = arith.ori %320, %322 : i1
    %cst_153 = arith.constant 1.000000e+00 : f32
    %324 = arith.addf %cst_153, %0 : f32
    %325 = arith.extui %323 : i1 to i32
    %326 = arith.sitofp %325 : i32 to f32
    %327 = arith.mulf %324, %326 : f32
    %cst_154 = arith.constant 1.000000e+00 : f32
    %328 = arith.addf %cst_154, %327 : f32
    %329 = vector.broadcast %328 : f32 to vector<1x1xf32>
    %330 = arith.mulf %329, %312 : vector<1x1xf32>
    %331 = arith.addf %301, %330 : vector<1x1xf32>
    %c11 = arith.constant 11 : index
    %332 = memref.load %arg0[%c11] : memref<16xi32, #tpu.memory_space<smem>>
    %c11_155 = arith.constant 11 : index
    %c0_156 = arith.constant 0 : index
    %333 = vector.load %arg3[%c11_155, %c0_156] : memref<16x32xf32, #tpu.memory_space<vmem>>, vector<1x32xf32>
    %334 = arith.index_cast %332 : i32 to index
    %c0_157 = arith.constant 0 : index
    %335 = vector.load %arg4[%334, %c0_157] : memref<4x32xf32, #tpu.memory_space<vmem>>, vector<1x32xf32>
    %336 = arith.subf %333, %335 : vector<1x32xf32>
    %cst_158 = arith.constant 9.99999997E-7 : f32
    %337 = vector.broadcast %cst_158 : f32 to vector<1x32xf32>
    %338 = arith.addf %336, %337 : vector<1x32xf32>
    %339 = arith.mulf %338, %338 : vector<1x32xf32>
    %cst_159 = arith.constant dense<0.000000e+00> : vector<1xf32>
    %340 = vector.multi_reduction <add>, %339, %cst_159 [1] : vector<1x32xf32> to vector<1xf32>
    %341 = vector.shape_cast %340 : vector<1xf32> to vector<1x1xf32>
    %342 = math.sqrt %341 : vector<1x1xf32>
    %c0_160 = arith.constant 0 : index
    %343 = memref.load %arg1[%c0_160] : memref<4xi32, #tpu.memory_space<smem>>
    %c11_i32 = arith.constant 11 : i32
    %344 = arith.cmpi eq, %343, %c11_i32 : i32
    %c1_161 = arith.constant 1 : index
    %345 = memref.load %arg1[%c1_161] : memref<4xi32, #tpu.memory_space<smem>>
    %c11_i32_162 = arith.constant 11 : i32
    %346 = arith.cmpi eq, %345, %c11_i32_162 : i32
    %347 = arith.ori %344, %346 : i1
    %c2_163 = arith.constant 2 : index
    %348 = memref.load %arg1[%c2_163] : memref<4xi32, #tpu.memory_space<smem>>
    %c11_i32_164 = arith.constant 11 : i32
    %349 = arith.cmpi eq, %348, %c11_i32_164 : i32
    %350 = arith.ori %347, %349 : i1
    %c3_165 = arith.constant 3 : index
    %351 = memref.load %arg1[%c3_165] : memref<4xi32, #tpu.memory_space<smem>>
    %c11_i32_166 = arith.constant 11 : i32
    %352 = arith.cmpi eq, %351, %c11_i32_166 : i32
    %353 = arith.ori %350, %352 : i1
    %cst_167 = arith.constant 1.000000e+00 : f32
    %354 = arith.addf %cst_167, %0 : f32
    %355 = arith.extui %353 : i1 to i32
    %356 = arith.sitofp %355 : i32 to f32
    %357 = arith.mulf %354, %356 : f32
    %cst_168 = arith.constant 1.000000e+00 : f32
    %358 = arith.addf %cst_168, %357 : f32
    %359 = vector.broadcast %358 : f32 to vector<1x1xf32>
    %360 = arith.mulf %359, %342 : vector<1x1xf32>
    %361 = arith.addf %331, %360 : vector<1x1xf32>
    %c12 = arith.constant 12 : index
    %362 = memref.load %arg0[%c12] : memref<16xi32, #tpu.memory_space<smem>>
    %c12_169 = arith.constant 12 : index
    %c0_170 = arith.constant 0 : index
    %363 = vector.load %arg3[%c12_169, %c0_170] : memref<16x32xf32, #tpu.memory_space<vmem>>, vector<1x32xf32>
    %364 = arith.index_cast %362 : i32 to index
    %c0_171 = arith.constant 0 : index
    %365 = vector.load %arg4[%364, %c0_171] : memref<4x32xf32, #tpu.memory_space<vmem>>, vector<1x32xf32>
    %366 = arith.subf %363, %365 : vector<1x32xf32>
    %cst_172 = arith.constant 9.99999997E-7 : f32
    %367 = vector.broadcast %cst_172 : f32 to vector<1x32xf32>
    %368 = arith.addf %366, %367 : vector<1x32xf32>
    %369 = arith.mulf %368, %368 : vector<1x32xf32>
    %cst_173 = arith.constant dense<0.000000e+00> : vector<1xf32>
    %370 = vector.multi_reduction <add>, %369, %cst_173 [1] : vector<1x32xf32> to vector<1xf32>
    %371 = vector.shape_cast %370 : vector<1xf32> to vector<1x1xf32>
    %372 = math.sqrt %371 : vector<1x1xf32>
    %c0_174 = arith.constant 0 : index
    %373 = memref.load %arg1[%c0_174] : memref<4xi32, #tpu.memory_space<smem>>
    %c12_i32 = arith.constant 12 : i32
    %374 = arith.cmpi eq, %373, %c12_i32 : i32
    %c1_175 = arith.constant 1 : index
    %375 = memref.load %arg1[%c1_175] : memref<4xi32, #tpu.memory_space<smem>>
    %c12_i32_176 = arith.constant 12 : i32
    %376 = arith.cmpi eq, %375, %c12_i32_176 : i32
    %377 = arith.ori %374, %376 : i1
    %c2_177 = arith.constant 2 : index
    %378 = memref.load %arg1[%c2_177] : memref<4xi32, #tpu.memory_space<smem>>
    %c12_i32_178 = arith.constant 12 : i32
    %379 = arith.cmpi eq, %378, %c12_i32_178 : i32
    %380 = arith.ori %377, %379 : i1
    %c3_179 = arith.constant 3 : index
    %381 = memref.load %arg1[%c3_179] : memref<4xi32, #tpu.memory_space<smem>>
    %c12_i32_180 = arith.constant 12 : i32
    %382 = arith.cmpi eq, %381, %c12_i32_180 : i32
    %383 = arith.ori %380, %382 : i1
    %cst_181 = arith.constant 1.000000e+00 : f32
    %384 = arith.addf %cst_181, %0 : f32
    %385 = arith.extui %383 : i1 to i32
    %386 = arith.sitofp %385 : i32 to f32
    %387 = arith.mulf %384, %386 : f32
    %cst_182 = arith.constant 1.000000e+00 : f32
    %388 = arith.addf %cst_182, %387 : f32
    %389 = vector.broadcast %388 : f32 to vector<1x1xf32>
    %390 = arith.mulf %389, %372 : vector<1x1xf32>
    %391 = arith.addf %361, %390 : vector<1x1xf32>
    %c13 = arith.constant 13 : index
    %392 = memref.load %arg0[%c13] : memref<16xi32, #tpu.memory_space<smem>>
    %c13_183 = arith.constant 13 : index
    %c0_184 = arith.constant 0 : index
    %393 = vector.load %arg3[%c13_183, %c0_184] : memref<16x32xf32, #tpu.memory_space<vmem>>, vector<1x32xf32>
    %394 = arith.index_cast %392 : i32 to index
    %c0_185 = arith.constant 0 : index
    %395 = vector.load %arg4[%394, %c0_185] : memref<4x32xf32, #tpu.memory_space<vmem>>, vector<1x32xf32>
    %396 = arith.subf %393, %395 : vector<1x32xf32>
    %cst_186 = arith.constant 9.99999997E-7 : f32
    %397 = vector.broadcast %cst_186 : f32 to vector<1x32xf32>
    %398 = arith.addf %396, %397 : vector<1x32xf32>
    %399 = arith.mulf %398, %398 : vector<1x32xf32>
    %cst_187 = arith.constant dense<0.000000e+00> : vector<1xf32>
    %400 = vector.multi_reduction <add>, %399, %cst_187 [1] : vector<1x32xf32> to vector<1xf32>
    %401 = vector.shape_cast %400 : vector<1xf32> to vector<1x1xf32>
    %402 = math.sqrt %401 : vector<1x1xf32>
    %c0_188 = arith.constant 0 : index
    %403 = memref.load %arg1[%c0_188] : memref<4xi32, #tpu.memory_space<smem>>
    %c13_i32 = arith.constant 13 : i32
    %404 = arith.cmpi eq, %403, %c13_i32 : i32
    %c1_189 = arith.constant 1 : index
    %405 = memref.load %arg1[%c1_189] : memref<4xi32, #tpu.memory_space<smem>>
    %c13_i32_190 = arith.constant 13 : i32
    %406 = arith.cmpi eq, %405, %c13_i32_190 : i32
    %407 = arith.ori %404, %406 : i1
    %c2_191 = arith.constant 2 : index
    %408 = memref.load %arg1[%c2_191] : memref<4xi32, #tpu.memory_space<smem>>
    %c13_i32_192 = arith.constant 13 : i32
    %409 = arith.cmpi eq, %408, %c13_i32_192 : i32
    %410 = arith.ori %407, %409 : i1
    %c3_193 = arith.constant 3 : index
    %411 = memref.load %arg1[%c3_193] : memref<4xi32, #tpu.memory_space<smem>>
    %c13_i32_194 = arith.constant 13 : i32
    %412 = arith.cmpi eq, %411, %c13_i32_194 : i32
    %413 = arith.ori %410, %412 : i1
    %cst_195 = arith.constant 1.000000e+00 : f32
    %414 = arith.addf %cst_195, %0 : f32
    %415 = arith.extui %413 : i1 to i32
    %416 = arith.sitofp %415 : i32 to f32
    %417 = arith.mulf %414, %416 : f32
    %cst_196 = arith.constant 1.000000e+00 : f32
    %418 = arith.addf %cst_196, %417 : f32
    %419 = vector.broadcast %418 : f32 to vector<1x1xf32>
    %420 = arith.mulf %419, %402 : vector<1x1xf32>
    %421 = arith.addf %391, %420 : vector<1x1xf32>
    %c14 = arith.constant 14 : index
    %422 = memref.load %arg0[%c14] : memref<16xi32, #tpu.memory_space<smem>>
    %c14_197 = arith.constant 14 : index
    %c0_198 = arith.constant 0 : index
    %423 = vector.load %arg3[%c14_197, %c0_198] : memref<16x32xf32, #tpu.memory_space<vmem>>, vector<1x32xf32>
    %424 = arith.index_cast %422 : i32 to index
    %c0_199 = arith.constant 0 : index
    %425 = vector.load %arg4[%424, %c0_199] : memref<4x32xf32, #tpu.memory_space<vmem>>, vector<1x32xf32>
    %426 = arith.subf %423, %425 : vector<1x32xf32>
    %cst_200 = arith.constant 9.99999997E-7 : f32
    %427 = vector.broadcast %cst_200 : f32 to vector<1x32xf32>
    %428 = arith.addf %426, %427 : vector<1x32xf32>
    %429 = arith.mulf %428, %428 : vector<1x32xf32>
    %cst_201 = arith.constant dense<0.000000e+00> : vector<1xf32>
    %430 = vector.multi_reduction <add>, %429, %cst_201 [1] : vector<1x32xf32> to vector<1xf32>
    %431 = vector.shape_cast %430 : vector<1xf32> to vector<1x1xf32>
    %432 = math.sqrt %431 : vector<1x1xf32>
    %c0_202 = arith.constant 0 : index
    %433 = memref.load %arg1[%c0_202] : memref<4xi32, #tpu.memory_space<smem>>
    %c14_i32 = arith.constant 14 : i32
    %434 = arith.cmpi eq, %433, %c14_i32 : i32
    %c1_203 = arith.constant 1 : index
    %435 = memref.load %arg1[%c1_203] : memref<4xi32, #tpu.memory_space<smem>>
    %c14_i32_204 = arith.constant 14 : i32
    %436 = arith.cmpi eq, %435, %c14_i32_204 : i32
    %437 = arith.ori %434, %436 : i1
    %c2_205 = arith.constant 2 : index
    %438 = memref.load %arg1[%c2_205] : memref<4xi32, #tpu.memory_space<smem>>
    %c14_i32_206 = arith.constant 14 : i32
    %439 = arith.cmpi eq, %438, %c14_i32_206 : i32
    %440 = arith.ori %437, %439 : i1
    %c3_207 = arith.constant 3 : index
    %441 = memref.load %arg1[%c3_207] : memref<4xi32, #tpu.memory_space<smem>>
    %c14_i32_208 = arith.constant 14 : i32
    %442 = arith.cmpi eq, %441, %c14_i32_208 : i32
    %443 = arith.ori %440, %442 : i1
    %cst_209 = arith.constant 1.000000e+00 : f32
    %444 = arith.addf %cst_209, %0 : f32
    %445 = arith.extui %443 : i1 to i32
    %446 = arith.sitofp %445 : i32 to f32
    %447 = arith.mulf %444, %446 : f32
    %cst_210 = arith.constant 1.000000e+00 : f32
    %448 = arith.addf %cst_210, %447 : f32
    %449 = vector.broadcast %448 : f32 to vector<1x1xf32>
    %450 = arith.mulf %449, %432 : vector<1x1xf32>
    %451 = arith.addf %421, %450 : vector<1x1xf32>
    %c0_211 = arith.constant 0 : index
    %c0_212 = arith.constant 0 : index
    %452 = vector.load %arg5[%c0_211, %c0_212] : memref<1x1xf32, #tpu.memory_space<vmem>>, vector<1x1xf32>
    tpu.vector_store %arg5[%c0_211, %c0_212], %451 {strides = array<i32>} : memref<1x1xf32, #tpu.memory_space<vmem>>, vector<1x1xf32>,
    return
  }
}

</mosaic_0001>

<llo_original>
// kernel: tpu_custom_call.1
$region0: #{tpu_custom_call.1}
  #allocation0 [shape = 'u32[]', space=smem, size = 0x4, offset = 0x4, fixed_abs, tag = 'smem constant byte address 0x4 - core index']
  #allocation1 [shape = 'u32[72,128]{1,0:T(1,128)}', space=vmem, size = 0x9000, scoped, tag = 'internal scratch']
  #allocation2 [shape = 'f32[1]{0:T(128)S(6)}', space=smem, size = 0x200, scoped, tag = 'scoped memory for tpu_custom_call.1']
  %s0 = inlined_call_operand.hbm [shape: s32[16], index: 0, kind: input, shape index: {}]
  %s1 = inlined_call_operand.hbm [shape: s32[4], index: 1, kind: input, shape index: {}]
  %s2 = inlined_call_operand.<no memory space> [shape: f32[1], index: 2, kind: input, shape index: {}]
  %s3 = inlined_call_operand.hbm [shape: f32[16,32], index: 3, kind: input, shape index: {}]
  %s4 = inlined_call_operand.vmem [shape: f32[4,32], index: 4, kind: input, shape index: {}]
  %s5 = inlined_call_operand.hbm [shape: f32[1,1], index: 5, kind: output, shape index: {}]
  %s6 = sld [smem:[#allocation0]]
  $region42: #{tpu_custom_call.1} parent=0
    _
  %s8 = ssub.s32 1, %s6
  %s9 = scalar_select 0, %s8, %s6
  %10 = sst [smem:[#allocation2]] %s2
  $region1: #{tpu_custom_call.1} parent=0
    #allocation3 [shape = 'u8[512]{0}', space=smem, size = 0x200, scoped, tag = 'input window, operand 0, single buffered']
    #allocation4 [shape = 's32[1]{0}', space=sflag, size = 0x4, scoped, tag = 'scoped memory for tpu_custom_call.1']
    #allocation5 [shape = 's32[1]{0}', space=sflag, size = 0x4, scoped, tag = 'scoped memory for tpu_custom_call.1']
    #allocation6 [shape = 's32[1]{0}', space=sflag, size = 0x4, scoped, tag = 'scoped memory for tpu_custom_call.1']
    #allocation7 [shape = 'u8[512]{0}', space=smem, size = 0x200, scoped, tag = 'input window, operand 1, single buffered']
    #allocation8 [shape = 's32[1]{0}', space=sflag, size = 0x4, scoped, tag = 'scoped memory for tpu_custom_call.1']
    #allocation9 [shape = 'u8[8192]{0}', space=vmem, size = 0x2000, scoped, tag = 'input window, operand 3, single buffered']
    #allocation10 [shape = 'u8[512]{0}', space=vmem, size = 0x400, scoped, tag = 'output window, operand 0, single buffered']
    %11 = vsyncpa [#allocation6], 0
    %12 = vsyncpa [#allocation8], 0
    %13 = vsyncpa [#allocation4], 0
    %14 = vsyncpa [#allocation5], 0
    // Predicated region
    $region2: #{tpu_custom_call.1} parent=1 // pred_check
      _
    $region3: #{tpu_custom_call.1} parent=1 // pred_check_branch
      %16 = sbr.rel (0) target = $region5
    $region4: #{tpu_custom_call.1} parent=1 // pred_region
      %18 = vsyncadd [#allocation6], 0
      %s20 = sshll.u32 %s0, 4
      %s21 = int_to_ptr.hbm [resolvable:$true] %s20
      %23 = dma.hbm_to_smem %s21, 16, [#allocation3], [#allocation6]
    $region5: #{tpu_custom_call.1} parent=1 // pred_fallthru
      _
    // Predicated region
    $region6: #{tpu_custom_call.1} parent=1 // pred_check
      _
    $region7: #{tpu_custom_call.1} parent=1 // pred_check_branch
      %25 = sbr.rel (0) target = $region9
    $region8: #{tpu_custom_call.1} parent=1 // pred_region
      %27 = vsyncadd [#allocation8], 0
      %s29 = sshll.u32 %s1, 4
      %s30 = int_to_ptr.hbm [resolvable:$true] %s29
      %32 = dma.hbm_to_smem %s30, 16, [#allocation7], [#allocation8]
    $region9: #{tpu_custom_call.1} parent=1 // pred_fallthru
      _
    // Predicated region
    $region10: #{tpu_custom_call.1} parent=1 // pred_check
      _
    $region11: #{tpu_custom_call.1} parent=1 // pred_check_branch
      %34 = sbr.rel (0) target = $region13
    $region12: #{tpu_custom_call.1} parent=1 // pred_region
      _
    $region13: #{tpu_custom_call.1} parent=1 // pred_fallthru
      _
    // Predicated region
    $region14: #{tpu_custom_call.1} parent=1 // pred_check
      _
    $region15: #{tpu_custom_call.1} parent=1 // pred_check_branch
      %36 = sbr.rel (0) target = $region17
    $region16: #{tpu_custom_call.1} parent=1 // pred_region
      %38 = vsyncadd [#allocation4], 0
      %s39 = sshll.u32 %s3, 4
      %s40 = int_to_ptr.hbm [resolvable:$true] %s39
      %s41 = sshll.u32 [#allocation9], 4
      %s42 = int_to_ptr.vmem [resolvable:$true] %s41
      %47 = dma.hbm_to_vmem [thread:$0]  %s40, 256, %s42, [#allocation4], 128, 128, 8
    $region17: #{tpu_custom_call.1} parent=1 // pred_fallthru
      _
    // Predicated region
    $region18: #{tpu_custom_call.1} parent=1 // pred_check
      _
    $region19: #{tpu_custom_call.1} parent=1 // pred_check_branch
      %49 = sbr.rel (0) target = $region21
    $region20: #{tpu_custom_call.1} parent=1 // pred_region
      _
    $region21: #{tpu_custom_call.1} parent=1 // pred_fallthru
      _
    // Predicated region
    $region22: #{tpu_custom_call.1} parent=1 // pred_check
      _
    $region23: #{tpu_custom_call.1} parent=1 // pred_check_branch
      %51 = sbr.rel (0) target = $region25
    $region24: #{tpu_custom_call.1} parent=1 // pred_region
      %53 = dma.done [#allocation6], 16
    $region25: #{tpu_custom_call.1} parent=1 // pred_fallthru
      _
    // Predicated region
    $region26: #{tpu_custom_call.1} parent=1 // pred_check
      _
    $region27: #{tpu_custom_call.1} parent=1 // pred_check_branch
      %55 = sbr.rel (0) target = $region29
    $region28: #{tpu_custom_call.1} parent=1 // pred_region
      %57 = dma.done [#allocation8], 16
    $region29: #{tpu_custom_call.1} parent=1 // pred_fallthru
      _
    // Predicated region
    $region30: #{tpu_custom_call.1} parent=1 // pred_check
      _
    $region31: #{tpu_custom_call.1} parent=1 // pred_check_branch
      %59 = sbr.rel (0) target = $region33
    $region32: #{tpu_custom_call.1} parent=1 // pred_region
      %61 = dma.done [#allocation4], 256
    $region33: #{tpu_custom_call.1} parent=1 // pred_fallthru
      _
    %62 = sfence
    %s63 = sld [smem:[#allocation2]]
    %s64 = sld [smem:[#allocation3]]
    %v65 = vld [vmem:[#allocation9] sm:$0x1]
    %s66 = scalar_lea.vmem %s4, %s64
    %v67 = vld [vmem:[%s66] sm:$0x1]
    %v68 = vsub.f32 %v65, %v67
    %v69 = vadd.f32 %v68, 1e-06
    %v70 = vmul.f32 %v69, %v69
    %vm71 = vcmask 253952
    %v72 = vsel %vm71, %v70, 0.0
    %73 = vadd.xlane.f32.xlu0 %v72
    %v74 = vpop.xlane.xlu0 %73
    %v75 = vrsqrt.pop %v74
    %v76 = vmul.f32 %v75, %v74
    %v77 = vmul.f32 %v76, %v75
    %v78 = vmul.f32 0.5, %v77
    %v79 = vsub.f32 1.5, %v78
    %v80 = vmul.f32 %v75, %v79
    %v81 = vmul.f32 %v74, %v80
    %vm82 = vcmp.eq.f32.partialorder %v74, inf
    %v83 = vsel %vm82, %v74, %v81
    %vm84 = vcmp.eq.f32.partialorder %v74, 0.0
    %v85 = vand.u32 %v74, 2147483648
    %v86 = vsel %vm84, %v85, %v83
    %s87 = sld [smem:[#allocation7]]
    %p88 = scmp.eq.s32.totalorder %s87, 0
    %s89 = sld [smem:[#allocation7 + $0x1]]
    %p90 = scmp.eq.s32.totalorder %s89, 0
    %p91 = por %p88, %p90
    %s92 = sld [smem:[#allocation7 + $0x2]]
    %p93 = scmp.eq.s32.totalorder %s92, 0
    %p94 = por %p91, %p93
    %s95 = sld [smem:[#allocation7 + $0x3]]
    %p96 = scmp.eq.s32.totalorder %s95, 0
    %p97 = por %p94, %p96
    %s98 = sadd.f32 %s63, 1.0
    %s99 = scalar_select %p97, 1, 0
    %s100 = scvt.s32.f32 %s99
    %s101 = smul.f32 %s98, %s100
    %s102 = sadd.f32 %s101, 1.0
    %v103 = vstv %s102
    %v104 = vmul.f32 %v103, %v86
    %v105 = vadd.f32 %v104, 0.0
    %s106 = sld [smem:[#allocation3 + $0x1]]
    %v107 = vld [vmem:[#allocation9 + $0x1] sm:$0x1]
    %s108 = scalar_lea.vmem %s4, %s106
    %v109 = vld [vmem:[%s108] sm:$0x1]
    %v110 = vsub.f32 %v107, %v109
    %v111 = vadd.f32 %v110, 1e-06
    %v112 = vmul.f32 %v111, %v111
    %v113 = vsel %vm71, %v112, 0.0
    %114 = vadd.xlane.f32.xlu0 %v113
    %v115 = vpop.xlane.xlu0 %114
    %v116 = vrsqrt.pop %v115
    %v117 = vmul.f32 %v116, %v115
    %v118 = vmul.f32 %v117, %v116
    %v119 = vmul.f32 0.5, %v118
    %v120 = vsub.f32 1.5, %v119
    %v121 = vmul.f32 %v116, %v120
    %v122 = vmul.f32 %v115, %v121
    %vm123 = vcmp.eq.f32.partialorder %v115, inf
    %v124 = vsel %vm123, %v115, %v122
    %vm125 = vcmp.eq.f32.partialorder %v115, 0.0
    %v126 = vand.u32 %v115, 2147483648
    %v127 = vsel %vm125, %v126, %v124
    %p128 = scmp.eq.s32.totalorder %s87, 1
    %p129 = scmp.eq.s32.totalorder %s89, 1
    %p130 = por %p128, %p129
    %p131 = scmp.eq.s32.totalorder %s92, 1
    %p132 = por %p130, %p131
    %p133 = scmp.eq.s32.totalorder %s95, 1
    %p134 = por %p132, %p133
    %s135 = scalar_select %p134, 1, 0
    %s136 = scvt.s32.f32 %s135
    %s137 = smul.f32 %s98, %s136
    %s138 = sadd.f32 %s137, 1.0
    %v139 = vstv %s138
    %v140 = vmul.f32 %v139, %v127
    %v141 = vadd.f32 %v105, %v140
    %s142 = sld [smem:[#allocation3 + $0x2]]
    %v143 = vld [vmem:[#allocation9 + $0x2] sm:$0x1]
    %s144 = scalar_lea.vmem %s4, %s142
    %v145 = vld [vmem:[%s144] sm:$0x1]
    %v146 = vsub.f32 %v143, %v145
    %v147 = vadd.f32 %v146, 1e-06
    %v148 = vmul.f32 %v147, %v147
    %v149 = vsel %vm71, %v148, 0.0
    %150 = vadd.xlane.f32.xlu0 %v149
    %v151 = vpop.xlane.xlu0 %150
    %v152 = vrsqrt.pop %v151
    %v153 = vmul.f32 %v152, %v151
    %v154 = vmul.f32 %v153, %v152
    %v155 = vmul.f32 0.5, %v154
    %v156 = vsub.f32 1.5, %v155
    %v157 = vmul.f32 %v152, %v156
    %v158 = vmul.f32 %v151, %v157
    %vm159 = vcmp.eq.f32.partialorder %v151, inf
    %v160 = vsel %vm159, %v151, %v158
    %vm161 = vcmp.eq.f32.partialorder %v151, 0.0
    %v162 = vand.u32 %v151, 2147483648
    %v163 = vsel %vm161, %v162, %v160
    %p164 = scmp.eq.s32.totalorder %s87, 2
    %p165 = scmp.eq.s32.totalorder %s89, 2
    %p166 = por %p164, %p165
    %p167 = scmp.eq.s32.totalorder %s92, 2
    %p168 = por %p166, %p167
    %p169 = scmp.eq.s32.totalorder %s95, 2
    %p170 = por %p168, %p169
    %s171 = scalar_select %p170, 1, 0
    %s172 = scvt.s32.f32 %s171
    %s173 = smul.f32 %s98, %s172
    %s174 = sadd.f32 %s173, 1.0
    %v175 = vstv %s174
    %v176 = vmul.f32 %v175, %v163
    %v177 = vadd.f32 %v141, %v176
    %s178 = sld [smem:[#allocation3 + $0x3]]
    %v179 = vld [vmem:[#allocation9 + $0x3] sm:$0x1]
    %s180 = scalar_lea.vmem %s4, %s178
    %v181 = vld [vmem:[%s180] sm:$0x1]
    %v182 = vsub.f32 %v179, %v181
    %v183 = vadd.f32 %v182, 1e-06
    %v184 = vmul.f32 %v183, %v183
    %v185 = vsel %vm71, %v184, 0.0
    %186 = vadd.xlane.f32.xlu0 %v185
    %v187 = vpop.xlane.xlu0 %186
    %v188 = vrsqrt.pop %v187
    %v189 = vmul.f32 %v188, %v187
    %v190 = vmul.f32 %v189, %v188
    %v191 = vmul.f32 0.5, %v190
    %v192 = vsub.f32 1.5, %v191
    %v193 = vmul.f32 %v188, %v192
    %v194 = vmul.f32 %v187, %v193
    %vm195 = vcmp.eq.f32.partialorder %v187, inf
    %v196 = vsel %vm195, %v187, %v194
    %vm197 = vcmp.eq.f32.partialorder %v187, 0.0
    %v198 = vand.u32 %v187, 2147483648
    %v199 = vsel %vm197, %v198, %v196
    %p200 = scmp.eq.s32.totalorder %s87, 3
    %p201 = scmp.eq.s32.totalorder %s89, 3
    %p202 = por %p200, %p201
    %p203 = scmp.eq.s32.totalorder %s92, 3
    %p204 = por %p202, %p203
    %p205 = scmp.eq.s32.totalorder %s95, 3
    %p206 = por %p204, %p205
    %s207 = scalar_select %p206, 1, 0
    %s208 = scvt.s32.f32 %s207
    %s209 = smul.f32 %s98, %s208
    %s210 = sadd.f32 %s209, 1.0
    %v211 = vstv %s210
    %v212 = vmul.f32 %v211, %v199
    %v213 = vadd.f32 %v177, %v212
    %s214 = sld [smem:[#allocation3 + $0x4]]
    %v215 = vld [vmem:[#allocation9 + $0x4] sm:$0x1]
    %s216 = scalar_lea.vmem %s4, %s214
    %v217 = vld [vmem:[%s216] sm:$0x1]
    %v218 = vsub.f32 %v215, %v217
    %v219 = vadd.f32 %v218, 1e-06
    %v220 = vmul.f32 %v219, %v219
    %v221 = vsel %vm71, %v220, 0.0
    %222 = vadd.xlane.f32.xlu0 %v221
    %v223 = vpop.xlane.xlu0 %222
    %v224 = vrsqrt.pop %v223
    %v225 = vmul.f32 %v224, %v223
    %v226 = vmul.f32 %v225, %v224
    %v227 = vmul.f32 0.5, %v226
    %v228 = vsub.f32 1.5, %v227
    %v229 = vmul.f32 %v224, %v228
    %v230 = vmul.f32 %v223, %v229
    %vm231 = vcmp.eq.f32.partialorder %v223, inf
    %v232 = vsel %vm231, %v223, %v230
    %vm233 = vcmp.eq.f32.partialorder %v223, 0.0
    %v234 = vand.u32 %v223, 2147483648
    %v235 = vsel %vm233, %v234, %v232
    %p236 = scmp.eq.s32.totalorder %s87, 4
    %p237 = scmp.eq.s32.totalorder %s89, 4
    %p238 = por %p236, %p237
    %p239 = scmp.eq.s32.totalorder %s92, 4
    %p240 = por %p238, %p239
    %p241 = scmp.eq.s32.totalorder %s95, 4
    %p242 = por %p240, %p241
    %s243 = scalar_select %p242, 1, 0
    %s244 = scvt.s32.f32 %s243
    %s245 = smul.f32 %s98, %s244
    %s246 = sadd.f32 %s245, 1.0
    %v247 = vstv %s246
    %v248 = vmul.f32 %v247, %v235
    %v249 = vadd.f32 %v213, %v248
    %s250 = sld [smem:[#allocation3 + $0x5]]
    %v251 = vld [vmem:[#allocation9 + $0x5] sm:$0x1]
    %s252 = scalar_lea.vmem %s4, %s250
    %v253 = vld [vmem:[%s252] sm:$0x1]
    %v254 = vsub.f32 %v251, %v253
    %v255 = vadd.f32 %v254, 1e-06
    %v256 = vmul.f32 %v255, %v255
    %v257 = vsel %vm71, %v256, 0.0
    %258 = vadd.xlane.f32.xlu0 %v257
    %v259 = vpop.xlane.xlu0 %258
    %v260 = vrsqrt.pop %v259
    %v261 = vmul.f32 %v260, %v259
    %v262 = vmul.f32 %v261, %v260
    %v263 = vmul.f32 0.5, %v262
    %v264 = vsub.f32 1.5, %v263
    %v265 = vmul.f32 %v260, %v264
    %v266 = vmul.f32 %v259, %v265
    %vm267 = vcmp.eq.f32.partialorder %v259, inf
    %v268 = vsel %vm267, %v259, %v266
    %vm269 = vcmp.eq.f32.partialorder %v259, 0.0
    %v270 = vand.u32 %v259, 2147483648
    %v271 = vsel %vm269, %v270, %v268
    %p272 = scmp.eq.s32.totalorder %s87, 5
    %p273 = scmp.eq.s32.totalorder %s89, 5
    %p274 = por %p272, %p273
    %p275 = scmp.eq.s32.totalorder %s92, 5
    %p276 = por %p274, %p275
    %p277 = scmp.eq.s32.totalorder %s95, 5
    %p278 = por %p276, %p277
    %s279 = scalar_select %p278, 1, 0
    %s280 = scvt.s32.f32 %s279
    %s281 = smul.f32 %s98, %s280
    %s282 = sadd.f32 %s281, 1.0
    %v283 = vstv %s282
    %v284 = vmul.f32 %v283, %v271
    %v285 = vadd.f32 %v249, %v284
    %s286 = sld [smem:[#allocation3 + $0x6]]
    %v287 = vld [vmem:[#allocation9 + $0x6] sm:$0x1]
    %s288 = scalar_lea.vmem %s4, %s286
    %v289 = vld [vmem:[%s288] sm:$0x1]
    %v290 = vsub.f32 %v287, %v289
    %v291 = vadd.f32 %v290, 1e-06
    %v292 = vmul.f32 %v291, %v291
    %v293 = vsel %vm71, %v292, 0.0
    %294 = vadd.xlane.f32.xlu0 %v293
    %v295 = vpop.xlane.xlu0 %294
    %v296 = vrsqrt.pop %v295
    %v297 = vmul.f32 %v296, %v295
    %v298 = vmul.f32 %v297, %v296
    %v299 = vmul.f32 0.5, %v298
    %v300 = vsub.f32 1.5, %v299
    %v301 = vmul.f32 %v296, %v300
    %v302 = vmul.f32 %v295, %v301
    %vm303 = vcmp.eq.f32.partialorder %v295, inf
    %v304 = vsel %vm303, %v295, %v302
    %vm305 = vcmp.eq.f32.partialorder %v295, 0.0
    %v306 = vand.u32 %v295, 2147483648
    %v307 = vsel %vm305, %v306, %v304
    %p308 = scmp.eq.s32.totalorder %s87, 6
    %p309 = scmp.eq.s32.totalorder %s89, 6
    %p310 = por %p308, %p309
    %p311 = scmp.eq.s32.totalorder %s92, 6
    %p312 = por %p310, %p311
    %p313 = scmp.eq.s32.totalorder %s95, 6
    %p314 = por %p312, %p313
    %s315 = scalar_select %p314, 1, 0
    %s316 = scvt.s32.f32 %s315
    %s317 = smul.f32 %s98, %s316
    %s318 = sadd.f32 %s317, 1.0
    %v319 = vstv %s318
    %v320 = vmul.f32 %v319, %v307
    %v321 = vadd.f32 %v285, %v320
    %s322 = sld [smem:[#allocation3 + $0x7]]
    %v323 = vld [vmem:[#allocation9 + $0x7] sm:$0x1]
    %s324 = scalar_lea.vmem %s4, %s322
    %v325 = vld [vmem:[%s324] sm:$0x1]
    %v326 = vsub.f32 %v323, %v325
    %v327 = vadd.f32 %v326, 1e-06
    %v328 = vmul.f32 %v327, %v327
    %v329 = vsel %vm71, %v328, 0.0
    %330 = vadd.xlane.f32.xlu0 %v329
    %v331 = vpop.xlane.xlu0 %330
    %v332 = vrsqrt.pop %v331
    %v333 = vmul.f32 %v332, %v331
    %v334 = vmul.f32 %v333, %v332
    %v335 = vmul.f32 0.5, %v334
    %v336 = vsub.f32 1.5, %v335
    %v337 = vmul.f32 %v332, %v336
    %v338 = vmul.f32 %v331, %v337
    %vm339 = vcmp.eq.f32.partialorder %v331, inf
    %v340 = vsel %vm339, %v331, %v338
    %vm341 = vcmp.eq.f32.partialorder %v331, 0.0
    %v342 = vand.u32 %v331, 2147483648
    %v343 = vsel %vm341, %v342, %v340
    %p344 = scmp.eq.s32.totalorder %s87, 7
    %p345 = scmp.eq.s32.totalorder %s89, 7
    %p346 = por %p344, %p345
    %p347 = scmp.eq.s32.totalorder %s92, 7
    %p348 = por %p346, %p347
    %p349 = scmp.eq.s32.totalorder %s95, 7
    %p350 = por %p348, %p349
    %s351 = scalar_select %p350, 1, 0
    %s352 = scvt.s32.f32 %s351
    %s353 = smul.f32 %s98, %s352
    %s354 = sadd.f32 %s353, 1.0
    %v355 = vstv %s354
    %v356 = vmul.f32 %v355, %v343
    %v357 = vadd.f32 %v321, %v356
    %s358 = sld [smem:[#allocation3 + $0x8]]
    %v359 = vld [vmem:[#allocation9 + $0x8] sm:$0x1]
    %s360 = scalar_lea.vmem %s4, %s358
    %v361 = vld [vmem:[%s360] sm:$0x1]
    %v362 = vsub.f32 %v359, %v361
    %v363 = vadd.f32 %v362, 1e-06
    %v364 = vmul.f32 %v363, %v363
    %v365 = vsel %vm71, %v364, 0.0
    %366 = vadd.xlane.f32.xlu0 %v365
    %v367 = vpop.xlane.xlu0 %366
    %v368 = vrsqrt.pop %v367
    %v369 = vmul.f32 %v368, %v367
    %v370 = vmul.f32 %v369, %v368
    %v371 = vmul.f32 0.5, %v370
    %v372 = vsub.f32 1.5, %v371
    %v373 = vmul.f32 %v368, %v372
    %v374 = vmul.f32 %v367, %v373
    %vm375 = vcmp.eq.f32.partialorder %v367, inf
    %v376 = vsel %vm375, %v367, %v374
    %vm377 = vcmp.eq.f32.partialorder %v367, 0.0
    %v378 = vand.u32 %v367, 2147483648
    %v379 = vsel %vm377, %v378, %v376
    %p380 = scmp.eq.s32.totalorder %s87, 8
    %p381 = scmp.eq.s32.totalorder %s89, 8
    %p382 = por %p380, %p381
    %p383 = scmp.eq.s32.totalorder %s92, 8
    %p384 = por %p382, %p383
    %p385 = scmp.eq.s32.totalorder %s95, 8
    %p386 = por %p384, %p385
    %s387 = scalar_select %p386, 1, 0
    %s388 = scvt.s32.f32 %s387
    %s389 = smul.f32 %s98, %s388
    %s390 = sadd.f32 %s389, 1.0
    %v391 = vstv %s390
    %v392 = vmul.f32 %v391, %v379
    %v393 = vadd.f32 %v357, %v392
    %s394 = sld [smem:[#allocation3 + $0x9]]
    %v395 = vld [vmem:[#allocation9 + $0x9] sm:$0x1]
    %s396 = scalar_lea.vmem %s4, %s394
    %v397 = vld [vmem:[%s396] sm:$0x1]
    %v398 = vsub.f32 %v395, %v397
    %v399 = vadd.f32 %v398, 1e-06
    %v400 = vmul.f32 %v399, %v399
    %v401 = vsel %vm71, %v400, 0.0
    %402 = vadd.xlane.f32.xlu0 %v401
    %v403 = vpop.xlane.xlu0 %402
    %v404 = vrsqrt.pop %v403
    %v405 = vmul.f32 %v404, %v403
    %v406 = vmul.f32 %v405, %v404
    %v407 = vmul.f32 0.5, %v406
    %v408 = vsub.f32 1.5, %v407
    %v409 = vmul.f32 %v404, %v408
    %v410 = vmul.f32 %v403, %v409
    %vm411 = vcmp.eq.f32.partialorder %v403, inf
    %v412 = vsel %vm411, %v403, %v410
    %vm413 = vcmp.eq.f32.partialorder %v403, 0.0
    %v414 = vand.u32 %v403, 2147483648
    %v415 = vsel %vm413, %v414, %v412
    %p416 = scmp.eq.s32.totalorder %s87, 9
    %p417 = scmp.eq.s32.totalorder %s89, 9
    %p418 = por %p416, %p417
    %p419 = scmp.eq.s32.totalorder %s92, 9
    %p420 = por %p418, %p419
    %p421 = scmp.eq.s32.totalorder %s95, 9
    %p422 = por %p420, %p421
    %s423 = scalar_select %p422, 1, 0
    %s424 = scvt.s32.f32 %s423
    %s425 = smul.f32 %s98, %s424
    %s426 = sadd.f32 %s425, 1.0
    %v427 = vstv %s426
    %v428 = vmul.f32 %v427, %v415
    %v429 = vadd.f32 %v393, %v428
    %s430 = sld [smem:[#allocation3 + $0xa]]
    %v431 = vld [vmem:[#allocation9 + $0xa] sm:$0x1]
    %s432 = scalar_lea.vmem %s4, %s430
    %v433 = vld [vmem:[%s432] sm:$0x1]
    %v434 = vsub.f32 %v431, %v433
    %v435 = vadd.f32 %v434, 1e-06
    %v436 = vmul.f32 %v435, %v435
    %v437 = vsel %vm71, %v436, 0.0
    %438 = vadd.xlane.f32.xlu0 %v437
    %v439 = vpop.xlane.xlu0 %438
    %v440 = vrsqrt.pop %v439
    %v441 = vmul.f32 %v440, %v439
    %v442 = vmul.f32 %v441, %v440
    %v443 = vmul.f32 0.5, %v442
    %v444 = vsub.f32 1.5, %v443
    %v445 = vmul.f32 %v440, %v444
    %v446 = vmul.f32 %v439, %v445
    %vm447 = vcmp.eq.f32.partialorder %v439, inf
    %v448 = vsel %vm447, %v439, %v446
    %vm449 = vcmp.eq.f32.partialorder %v439, 0.0
    %v450 = vand.u32 %v439, 2147483648
    %v451 = vsel %vm449, %v450, %v448
    %p452 = scmp.eq.s32.totalorder %s87, 10
    %p453 = scmp.eq.s32.totalorder %s89, 10
    %p454 = por %p452, %p453
    %p455 = scmp.eq.s32.totalorder %s92, 10
    %p456 = por %p454, %p455
    %p457 = scmp.eq.s32.totalorder %s95, 10
    %p458 = por %p456, %p457
    %s459 = scalar_select %p458, 1, 0
    %s460 = scvt.s32.f32 %s459
    %s461 = smul.f32 %s98, %s460
    %s462 = sadd.f32 %s461, 1.0
    %v463 = vstv %s462
    %v464 = vmul.f32 %v463, %v451
    %v465 = vadd.f32 %v429, %v464
    %s466 = sld [smem:[#allocation3 + $0xb]]
    %v467 = vld [vmem:[#allocation9 + $0xb] sm:$0x1]
    %s468 = scalar_lea.vmem %s4, %s466
    %v469 = vld [vmem:[%s468] sm:$0x1]
    %v470 = vsub.f32 %v467, %v469
    %v471 = vadd.f32 %v470, 1e-06
    %v472 = vmul.f32 %v471, %v471
    %v473 = vsel %vm71, %v472, 0.0
    %474 = vadd.xlane.f32.xlu0 %v473
    %v475 = vpop.xlane.xlu0 %474
    %v476 = vrsqrt.pop %v475
    %v477 = vmul.f32 %v476, %v475
    %v478 = vmul.f32 %v477, %v476
    %v479 = vmul.f32 0.5, %v478
    %v480 = vsub.f32 1.5, %v479
    %v481 = vmul.f32 %v476, %v480
    %v482 = vmul.f32 %v475, %v481
    %vm483 = vcmp.eq.f32.partialorder %v475, inf
    %v484 = vsel %vm483, %v475, %v482
    %vm485 = vcmp.eq.f32.partialorder %v475, 0.0
    %v486 = vand.u32 %v475, 2147483648
    %v487 = vsel %vm485, %v486, %v484
    %p488 = scmp.eq.s32.totalorder %s87, 11
    %p489 = scmp.eq.s32.totalorder %s89, 11
    %p490 = por %p488, %p489
    %p491 = scmp.eq.s32.totalorder %s92, 11
    %p492 = por %p490, %p491
    %p493 = scmp.eq.s32.totalorder %s95, 11
    %p494 = por %p492, %p493
    %s495 = scalar_select %p494, 1, 0
    %s496 = scvt.s32.f32 %s495
    %s497 = smul.f32 %s98, %s496
    %s498 = sadd.f32 %s497, 1.0
    %v499 = vstv %s498
    %v500 = vmul.f32 %v499, %v487
    %v501 = vadd.f32 %v465, %v500
    %s502 = sld [smem:[#allocation3 + $0xc]]
    %v503 = vld [vmem:[#allocation9 + $0xc] sm:$0x1]
    %s504 = scalar_lea.vmem %s4, %s502
    %v505 = vld [vmem:[%s504] sm:$0x1]
    %v506 = vsub.f32 %v503, %v505
    %v507 = vadd.f32 %v506, 1e-06
    %v508 = vmul.f32 %v507, %v507
    %v509 = vsel %vm71, %v508, 0.0
    %510 = vadd.xlane.f32.xlu0 %v509
    %v511 = vpop.xlane.xlu0 %510
    %v512 = vrsqrt.pop %v511
    %v513 = vmul.f32 %v512, %v511
    %v514 = vmul.f32 %v513, %v512
    %v515 = vmul.f32 0.5, %v514
    %v516 = vsub.f32 1.5, %v515
    %v517 = vmul.f32 %v512, %v516
    %v518 = vmul.f32 %v511, %v517
    %vm519 = vcmp.eq.f32.partialorder %v511, inf
    %v520 = vsel %vm519, %v511, %v518
    %vm521 = vcmp.eq.f32.partialorder %v511, 0.0
    %v522 = vand.u32 %v511, 2147483648
    %v523 = vsel %vm521, %v522, %v520
    %p524 = scmp.eq.s32.totalorder %s87, 12
    %p525 = scmp.eq.s32.totalorder %s89, 12
    %p526 = por %p524, %p525
    %p527 = scmp.eq.s32.totalorder %s92, 12
    %p528 = por %p526, %p527
    %p529 = scmp.eq.s32.totalorder %s95, 12
    %p530 = por %p528, %p529
    %s531 = scalar_select %p530, 1, 0
    %s532 = scvt.s32.f32 %s531
    %s533 = smul.f32 %s98, %s532
    %s534 = sadd.f32 %s533, 1.0
    %v535 = vstv %s534
    %v536 = vmul.f32 %v535, %v523
    %v537 = vadd.f32 %v501, %v536
    %s538 = sld [smem:[#allocation3 + $0xd]]
    %v539 = vld [vmem:[#allocation9 + $0xd] sm:$0x1]
    %s540 = scalar_lea.vmem %s4, %s538
    %v541 = vld [vmem:[%s540] sm:$0x1]
    %v542 = vsub.f32 %v539, %v541
    %v543 = vadd.f32 %v542, 1e-06
    %v544 = vmul.f32 %v543, %v543
    %v545 = vsel %vm71, %v544, 0.0
    %546 = vadd.xlane.f32.xlu0 %v545
    %v547 = vpop.xlane.xlu0 %546
    %v548 = vrsqrt.pop %v547
    %v549 = vmul.f32 %v548, %v547
    %v550 = vmul.f32 %v549, %v548
    %v551 = vmul.f32 0.5, %v550
    %v552 = vsub.f32 1.5, %v551
    %v553 = vmul.f32 %v548, %v552
    %v554 = vmul.f32 %v547, %v553
    %vm555 = vcmp.eq.f32.partialorder %v547, inf
    %v556 = vsel %vm555, %v547, %v554
    %vm557 = vcmp.eq.f32.partialorder %v547, 0.0
    %v558 = vand.u32 %v547, 2147483648
    %v559 = vsel %vm557, %v558, %v556
    %p560 = scmp.eq.s32.totalorder %s87, 13
    %p561 = scmp.eq.s32.totalorder %s89, 13
    %p562 = por %p560, %p561
    %p563 = scmp.eq.s32.totalorder %s92, 13
    %p564 = por %p562, %p563
    %p565 = scmp.eq.s32.totalorder %s95, 13
    %p566 = por %p564, %p565
    %s567 = scalar_select %p566, 1, 0
    %s568 = scvt.s32.f32 %s567
    %s569 = smul.f32 %s98, %s568
    %s570 = sadd.f32 %s569, 1.0
    %v571 = vstv %s570
    %v572 = vmul.f32 %v571, %v559
    %v573 = vadd.f32 %v537, %v572
    %s574 = sld [smem:[#allocation3 + $0xe]]
    %v575 = vld [vmem:[#allocation9 + $0xe] sm:$0x1]
    %s576 = scalar_lea.vmem %s4, %s574
    %v577 = vld [vmem:[%s576] sm:$0x1]
    %v578 = vsub.f32 %v575, %v577
    %v579 = vadd.f32 %v578, 1e-06
    %v580 = vmul.f32 %v579, %v579
    %v581 = vsel %vm71, %v580, 0.0
    %582 = vadd.xlane.f32.xlu0 %v581
    %v583 = vpop.xlane.xlu0 %582
    %v584 = vrsqrt.pop %v583
    %v585 = vmul.f32 %v584, %v583
    %v586 = vmul.f32 %v585, %v584
    %v587 = vmul.f32 0.5, %v586
    %v588 = vsub.f32 1.5, %v587
    %v589 = vmul.f32 %v584, %v588
    %v590 = vmul.f32 %v583, %v589
    %vm591 = vcmp.eq.f32.partialorder %v583, inf
    %v592 = vsel %vm591, %v583, %v590
    %vm593 = vcmp.eq.f32.partialorder %v583, 0.0
    %v594 = vand.u32 %v583, 2147483648
    %v595 = vsel %vm593, %v594, %v592
    %p596 = scmp.eq.s32.totalorder %s87, 14
    %p597 = scmp.eq.s32.totalorder %s89, 14
    %p598 = por %p596, %p597
    %p599 = scmp.eq.s32.totalorder %s92, 14
    %p600 = por %p598, %p599
    %p601 = scmp.eq.s32.totalorder %s95, 14
    %p602 = por %p600, %p601
    %s603 = scalar_select %p602, 1, 0
    %s604 = scvt.s32.f32 %s603
    %s605 = smul.f32 %s98, %s604
    %s606 = sadd.f32 %s605, 1.0
    %v607 = vstv %s606
    %v608 = vmul.f32 %v607, %v595
    %v609 = vadd.f32 %v573, %v608
    %vm610 = vcmask 0
    %611 = vst.msk [vmem:[#allocation10] sm:$0x1] %vm610, %v609
    // Predicated region
    $region34: #{tpu_custom_call.1} parent=1 // pred_check
      _
    $region35: #{tpu_custom_call.1} parent=1 // pred_check_branch
      %613 = sbr.rel (0) target = $region37
    $region36: #{tpu_custom_call.1} parent=1 // pred_region
      %615 = vsyncadd [#allocation5], 0
      %s617 = sshll.u32 [#allocation10], 4
      %s618 = int_to_ptr.vmem [resolvable:$true] %s617
      %s619 = sshll.u32 %s5, 4
      %s620 = int_to_ptr.hbm [resolvable:$true] %s619
      %622 = dma.vmem_to_hbm [thread:$0]  %s618, 16, %s620, [#allocation5]
    $region37: #{tpu_custom_call.1} parent=1 // pred_fallthru
      _
    // Predicated region
    $region38: #{tpu_custom_call.1} parent=1 // pred_check
      _
    $region39: #{tpu_custom_call.1} parent=1 // pred_check_branch
      %624 = sbr.rel (0) target = $region41
    $region40: #{tpu_custom_call.1} parent=1 // pred_region
      %626 = dma.done [#allocation5], 16
    $region41: #{tpu_custom_call.1} parent=1 // pred_fallthru
      _
    %627 = vsyncpa [#allocation4], 1
    %628 = vsyncpa [#allocation5], 1
    %629 = vsyncpa [#allocation6], 1
    %630 = vsyncpa [#allocation8], 1

</llo_original>
